<compile_context>
chip_gen: v7x
topology: tpu7x:2x2x1
jax: 0.10.0
libtpu: 0.0.40
codegen_flags: <defaults>
</compile_context>

<pallas_src>
import jax
import jax.numpy as jnp
import numpy as np
from jax.experimental import pallas as pl
from jax.experimental.pallas import tpu as pltpu


def linear_time_kernel(x_ref, w_ref, b_ref, o_ref):
    # x_ref: (Kt*c_in, TL)   bf16 im2col chunk (lane-dense)
    # w_ref: (c_out, Kt*c_in) bf16 folded conv weight
    # b_ref: (c_out, 1)       f32 bias
    # o_ref: (c_out, TL)      f32 lane-dense output chunk
    acc = jnp.dot(w_ref[...], x_ref[...], preferred_element_type=jnp.float32)
    o_ref[...] = (acc + b_ref[...]).astype(o_ref.dtype)


def linear_time_forward(x, weight, bias):
    """x: (B, c_in, N, T); weight: (c_out, c_in, 1, Kt); bias: (c_out,)."""
    B, c_in, N, T = x.shape
    c_out, c_in_w, kh, Kt = weight.shape
    assert kh == 1 and c_in_w == c_in
    T_out = T - Kt + 1
    KC = Kt * c_in
    L = B * N * T_out

    # Lane tiling: multiple of 128; fat chunks so per-step overhead amortizes.
    LANE_TILE = 512
    n_chunks = pl.cdiv(L, LANE_TILE)
    Lp = n_chunks * LANE_TILE

    # --- wrapper-side im2col (pure layout plumbing, done once by XLA) -------
    # xcol[k*c_in + c, (b*N + n)*T_out + t] = x[b, c, n, t + k]
    taps = jnp.stack([x[:, :, :, k:k + T_out] for k in range(Kt)], axis=0)
    xcol = jnp.transpose(taps, (0, 2, 1, 3, 4)).reshape(KC, L)
    xcol = jnp.pad(xcol, ((0, 0), (0, Lp - L)))            # zero pad columns
    # w2[o, k*c_in + c] = weight[o, c, 0, k]
    w2 = jnp.transpose(weight[:, :, 0, :], (0, 2, 1)).reshape(c_out, KC)

    # bf16 MXU operands (single-pass MXU); accumulation stays f32 in-kernel.
    xcol_bf = xcol.astype(jnp.bfloat16)
    w2_bf = w2.astype(jnp.bfloat16)
    b2 = bias.reshape(c_out, 1).astype(jnp.float32)

    # VMEM budget from actual tile bytes (double-buffered x/out + resident
    # weight/bias), with headroom; capped v7x-safe.
    tile_bytes = 2 * (KC * LANE_TILE * 2 + c_out * LANE_TILE * 4)
    tile_bytes += c_out * KC * 2 + c_out * 4
    vmem_limit = int(min(max(4 * tile_bytes, 4 << 20), 48 << 20))

    out_flat = pl.pallas_call(
        linear_time_kernel,
        out_shape=jax.ShapeDtypeStruct((c_out, Lp), x.dtype),
        grid_spec=pltpu.PrefetchScalarGridSpec(
            num_scalar_prefetch=0,
            grid=(n_chunks,),
            in_specs=[
                pl.BlockSpec((KC, LANE_TILE), lambda j: (0, j)),
                pl.BlockSpec((c_out, KC), lambda j: (0, 0)),
                pl.BlockSpec((c_out, 1), lambda j: (0, 0)),
            ],
            out_specs=pl.BlockSpec((c_out, LANE_TILE), lambda j: (0, j)),
        ),
        compiler_params=pltpu.CompilerParams(
            dimension_semantics=("arbitrary",),
            vmem_limit_bytes=vmem_limit,
        ),
    )(xcol_bf, w2_bf, b2)

    # Layout plumbing only: drop pad columns, un-flatten, batch axis first.
    out = out_flat[:, :L].reshape(c_out, B, N, T_out)
    return jnp.transpose(out, (1, 0, 2, 3))


def linear_time_reference(x, weight, bias):
    """Pure-JAX mirror of torch Conv2d(c_in, c_out, (1, Kt), bias=True)."""
    out = jax.lax.conv_general_dilated(
        x, weight, window_strides=(1, 1), padding="VALID",
        dimension_numbers=("NCHW", "OIHW", "NCHW"),
        precision=jax.lax.Precision.HIGHEST)
    return out + bias[None, :, None, None]


if __name__ == "__main__":
    B, C_IN, C_OUT, NUM_NODES, TEM_SIZE, KT = 2, 4, 8, 16, 16, 3

    key = jax.random.PRNGKey(0)
    k_x, k_w, k_b = jax.random.split(key, 3)

    x = jax.random.normal(k_x, (B, C_IN, NUM_NODES, TEM_SIZE), jnp.float32)
    bound = 1.0 / float(np.sqrt(C_IN * KT))          # PyTorch-style conv init range
    weight = jax.random.uniform(k_w, (C_OUT, C_IN, 1, KT), jnp.float32, -bound, bound)
    bias = jax.random.uniform(k_b, (C_OUT,), jnp.float32, -bound, bound)

    out = jax.block_until_ready(linear_time_forward(x, weight, bias))
    ref = linear_time_reference(x, weight, bias)

    assert out.shape == (B, C_OUT, NUM_NODES, TEM_SIZE - KT + 1)
    # Tolerance covers bf16 operand quantization over the Kt*c_in = 12-term
    # contraction (f32 accumulation); structural bugs would be O(1) off.
    np.testing.assert_allclose(np.asarray(out), np.asarray(ref), rtol=1e-2, atol=1e-2)

    print("KERNEL_OK")
</pallas_src>

<mosaic_0001>
module attributes {stable_mosaic.version = 11 : i64} {
  func.func @linear_time_kernel(%arg0: i32, %arg1: memref<12x512xbf16, #tpu.memory_space<vmem>>, %arg2: memref<8x12xbf16, #tpu.memory_space<vmem>>, %arg3: memref<8x1xf32, #tpu.memory_space<vmem>>, %arg4: memref<8x512xf32, #tpu.memory_space<vmem>>) attributes {dimension_semantics = [#tpu.dimension_semantics<arbitrary>], iteration_bounds = array<i64: 1>, scalar_prefetch = 0 : i64, scratch_operands = 0 : i64, tpu.core_type = #tpu.core_type<tc>, window_params = [{transform_indices = @transform_0, window_bounds = array<i64: 12, 512>}, {pipeline_mode = #tpu.pipeline_mode<synchronous>, transform_indices = @transform_1, window_bounds = array<i64: 8, 12>}, {pipeline_mode = #tpu.pipeline_mode<synchronous>, transform_indices = @transform_2, window_bounds = array<i64: 8, 1>}, {transform_indices = @transform_3, window_bounds = array<i64: 8, 512>}]} {
    %c0 = arith.constant 0 : index
    %c0_0 = arith.constant 0 : index
    %0 = vector.load %arg2[%c0, %c0_0] : memref<8x12xbf16, #tpu.memory_space<vmem>>, vector<8x12xbf16>
    %c0_1 = arith.constant 0 : index
    %c0_2 = arith.constant 0 : index
    %1 = vector.load %arg1[%c0_1, %c0_2] : memref<12x512xbf16, #tpu.memory_space<vmem>>, vector<12x512xbf16>
    %cst = arith.constant dense<0.000000e+00> : vector<8x512xf32>
    %2 = tpu.matmul %0, %1, %cst {dimension_numbers = #tpu.dot_dimension_numbers<[1], [0], [0], [1], [0, 0, 1, 1], [], []>} : vector<8x12xbf16>, vector<12x512xbf16>, vector<8x512xf32> -> vector<8x512xf32>
    %c0_3 = arith.constant 0 : index
    %c0_4 = arith.constant 0 : index
    %3 = vector.load %arg3[%c0_3, %c0_4] : memref<8x1xf32, #tpu.memory_space<vmem>>, vector<8x1xf32>
    %4 = vector.broadcast %3 : vector<8x1xf32> to vector<8x512xf32>
    %5 = arith.addf %2, %4 : vector<8x512xf32>
    %c0_5 = arith.constant 0 : index
    %c0_6 = arith.constant 0 : index
    %6 = vector.load %arg4[%c0_5, %c0_6] : memref<8x512xf32, #tpu.memory_space<vmem>>, vector<8x512xf32>
    tpu.vector_store %arg4[%c0_5, %c0_6], %5 {strides = array<i32>} : memref<8x512xf32, #tpu.memory_space<vmem>>, vector<8x512xf32>,
    return
  }
  func.func @transform_0(%arg0: i32) -> (i32, i32) {
    %c0_i32 = arith.constant 0 : i32
    %c0_i32_0 = arith.constant 0 : i32
    return %c0_i32, %arg0 : i32, i32
  }
  func.func @transform_1(%arg0: i32) -> (i32, i32) {
    %c0_i32 = arith.constant 0 : i32
    %c0_i32_0 = arith.constant 0 : i32
    %c0_i32_1 = arith.constant 0 : i32
    return %c0_i32, %c0_i32_0 : i32, i32
  }
  func.func @transform_2(%arg0: i32) -> (i32, i32) {
    %c0_i32 = arith.constant 0 : i32
    %c0_i32_0 = arith.constant 0 : i32
    %c0_i32_1 = arith.constant 0 : i32
    return %c0_i32, %c0_i32_0 : i32, i32
  }
  func.func @transform_3(%arg0: i32) -> (i32, i32) {
    %c0_i32 = arith.constant 0 : i32
    %c0_i32_0 = arith.constant 0 : i32
    return %c0_i32, %arg0 : i32, i32
  }
}

</mosaic_0001>

<llo_original>
// kernel: tpu_custom_call.1
$region0: #{tpu_custom_call.1}
  #allocation0 [shape = 'u32[]', space=smem, size = 0x4, offset = 0x4, fixed_abs, tag = 'smem constant byte address 0x4 - core index']
  #allocation1 [shape = 'u32[144,128]{1,0:T(1,128)}', space=vmem, size = 0x12000, scoped, tag = 'internal scratch']
  %s0 = inlined_call_operand.hbm [shape: bf16[12,512], index: 0, kind: input, shape index: {}]
  %s1 = inlined_call_operand.vmem [shape: bf16[8,12], index: 1, kind: input, shape index: {}]
  %s2 = inlined_call_operand.vmem [shape: f32[8,1], index: 2, kind: input, shape index: {}]
  %s3 = inlined_call_operand.hbm [shape: f32[8,512], index: 3, kind: output, shape index: {}]
  %s4 = sld [smem:[#allocation0]]
  $region26: #{tpu_custom_call.1} parent=0
    _
  %s6 = ssub.s32 1, %s4
  %s7 = scalar_select 0, %s6, %s4
  $region1: #{tpu_custom_call.1} parent=0
    #allocation2 [shape = 'u8[16384]{0}', space=vmem, size = 0x4000, scoped, tag = 'input window, operand 0, single buffered']
    #allocation3 [shape = 's32[1]{0}', space=sflag, size = 0x4, scoped, tag = 'scoped memory for tpu_custom_call.1']
    #allocation4 [shape = 's32[1]{0}', space=sflag, size = 0x4, scoped, tag = 'scoped memory for tpu_custom_call.1']
    #allocation5 [shape = 'u8[16384]{0}', space=vmem, size = 0x4000, scoped, tag = 'output window, operand 0, single buffered']
    %8 = vsyncpa [#allocation3], 0
    %9 = vsyncpa [#allocation4], 0
    // Predicated region
    $region2: #{tpu_custom_call.1} parent=1 // pred_check
      _
    $region3: #{tpu_custom_call.1} parent=1 // pred_check_branch
      %11 = sbr.rel (0) target = $region5
    $region4: #{tpu_custom_call.1} parent=1 // pred_region
      %s13 = ssub.s32 512, 512
      %14 = vsyncadd [#allocation3], %s13
      %s15 = sshll.u32 [#allocation2], 4
      %s16 = int_to_ptr.vmem [resolvable:$true] %s15
      %21 = dma.hbm_to_vmem [thread:$0]  %s0, 512, %s16, [#allocation3], 256, 256, 16
    $region5: #{tpu_custom_call.1} parent=1 // pred_fallthru
      _
    // Predicated region
    $region6: #{tpu_custom_call.1} parent=1 // pred_check
      _
    $region7: #{tpu_custom_call.1} parent=1 // pred_check_branch
      %23 = sbr.rel (0) target = $region9
    $region8: #{tpu_custom_call.1} parent=1 // pred_region
      _
    $region9: #{tpu_custom_call.1} parent=1 // pred_fallthru
      _
    // Predicated region
    $region10: #{tpu_custom_call.1} parent=1 // pred_check
      _
    $region11: #{tpu_custom_call.1} parent=1 // pred_check_branch
      %25 = sbr.rel (0) target = $region13
    $region12: #{tpu_custom_call.1} parent=1 // pred_region
      _
    $region13: #{tpu_custom_call.1} parent=1 // pred_fallthru
      _
    // Predicated region
    $region14: #{tpu_custom_call.1} parent=1 // pred_check
      _
    $region15: #{tpu_custom_call.1} parent=1 // pred_check_branch
      %27 = sbr.rel (0) target = $region17
    $region16: #{tpu_custom_call.1} parent=1 // pred_region
      %28 = dma.done [#allocation3], 512
    $region17: #{tpu_custom_call.1} parent=1 // pred_fallthru
      _
    %v30 = vld [vmem:[%s1] sm:$0xf]
    %v31 = vld [vmem:[#allocation2] sm:$0xff]
    %v32 = vld [vmem:[#allocation2 + $0x8] sm:$0xff]
    %v33 = vld [vmem:[#allocation2 + $0x10] sm:$0x33]
    %v34 = vld [vmem:[#allocation2 + $0x18] sm:$0x33]
    %v35 = vld [vmem:[%s2] sm:$0xff]
    %37 = vset.pattern.permute.xlu0 0
    %38 = vperm.xlu0 %37, %v35
    %v39 = vpop.permute.xlu0 %38
    %v45 = vunpack.c.l.b16 %v31
    %v46 = vunpack.c.h.b16 %v31
    %v47 = vunpack.c.l.b16 %v32
    %v48 = vunpack.c.h.b16 %v32
    %v49 = vunpack.c.l.b16 %v33
    %v50 = vunpack.c.h.b16 %v33
    %v51 = vunpack.c.l.b16 %v34
    %v52 = vunpack.c.h.b16 %v34
    %v53 = vpack.c.b16 %v49, %v45
    %v54 = vpack.c.b16 %v50, %v46
    %v55 = vpack.c.b16 %v51, %v47
    %v56 = vpack.c.b16 %v52, %v48
    %vm57 = vcmask 97280
    %v59 = vsel %vm57, %v30, 0
    %vm61 = vcmask 1045504
    %v63 = vsel %vm61, %v53, 0
    %v66 = vsel %vm61, %v54, 0
    %v69 = vsel %vm61, %v55, 0
    %v72 = vsel %vm61, %v56, 0
    %74 = vmatprep.subr.bf16.mxu0 %v66
    %75 = vmatpush1.bf16.msra.mxu0 %v63
    %76 = vmatprep.subr.bf16.mxu0 0
    %77 = vmatpush1.bf16.msra.mxu0 0
    %78 = vmatprep.subr.bf16.mxu0 0
    %79 = vmatpush1.bf16.msra.mxu0 0
    %80 = vmatprep.subr.bf16.mxu0 0
    %81 = vmatpush1.bf16.msra.mxu0 0
    %82 = vmatprep.subr.bf16.mxu0 0
    %83 = vmatpush1.bf16.msra.mxu0 0
    %84 = vmatprep.subr.bf16.mxu0 0
    %85 = vmatpush1.bf16.msra.mxu0 0
    %86 = vmatprep.subr.bf16.mxu0 0
    %87 = vmatpush1.bf16.msra.mxu0 0
    %88 = vmatprep.subr.bf16.mxu0 0
    %89 = vmatpush1.bf16.msra.mxu0 0
    %90 = vmatprep.subr.bf16.mxu0 0
    %91 = vmatpush1.bf16.msra.mxu0 0
    %92 = vmatprep.subr.bf16.mxu0 0
    %93 = vmatpush1.bf16.msra.mxu0 0
    %94 = vmatprep.subr.bf16.mxu0 0
    %95 = vmatpush1.bf16.msra.mxu0 0
    %96 = vmatprep.subr.bf16.mxu0 0
    %97 = vmatpush1.bf16.msra.mxu0 0
    %98 = vmatprep.subr.bf16.mxu0 0
    %99 = vmatpush1.bf16.msra.mxu0 0
    %100 = vmatprep.subr.bf16.mxu0 0
    %101 = vmatpush1.bf16.msra.mxu0 0
    %102 = vmatprep.subr.bf16.mxu0 0
    %103 = vmatpush1.bf16.msra.mxu0 0
    %104 = vmatprep.subr.bf16.mxu0 0
    %105 = vmatpush1.bf16.msra.mxu0 0
    %106 = vmatprep.mubr.bf16.mxu0 0
    %107 = vmatmul.mubr.bf16.gmra.mrb[0].mxu0 %v59
    %v108 = vpop.f32.mrb[0].mxu0
    %v109 = vadd.f32 %v39, %v108
    %v110 = vpop.f32.mrb[0].mxu0
    %v111 = vadd.f32 %v39, %v110
    %v112 = vpop.f32.mrb[0].mxu0
    %v113 = vpop.f32.mrb[0].mxu0
    %114 = vdwg.mxu0
    %115 = vmatprep.subr.bf16.mxu0 %v72
    %116 = vmatpush1.bf16.msra.mxu0 %v69
    %117 = vmatprep.subr.bf16.mxu0 0
    %118 = vmatpush1.bf16.msra.mxu0 0
    %119 = vmatprep.subr.bf16.mxu0 0
    %120 = vmatpush1.bf16.msra.mxu0 0
    %121 = vmatprep.subr.bf16.mxu0 0
    %122 = vmatpush1.bf16.msra.mxu0 0
    %123 = vmatprep.subr.bf16.mxu0 0
    %124 = vmatpush1.bf16.msra.mxu0 0
    %125 = vmatprep.subr.bf16.mxu0 0
    %126 = vmatpush1.bf16.msra.mxu0 0
    %127 = vmatprep.subr.bf16.mxu0 0
    %128 = vmatpush1.bf16.msra.mxu0 0
    %129 = vmatprep.subr.bf16.mxu0 0
    %130 = vmatpush1.bf16.msra.mxu0 0
    %131 = vmatprep.subr.bf16.mxu0 0
    %132 = vmatpush1.bf16.msra.mxu0 0
    %133 = vmatprep.subr.bf16.mxu0 0
    %134 = vmatpush1.bf16.msra.mxu0 0
    %135 = vmatprep.subr.bf16.mxu0 0
    %136 = vmatpush1.bf16.msra.mxu0 0
    %137 = vmatprep.subr.bf16.mxu0 0
    %138 = vmatpush1.bf16.msra.mxu0 0
    %139 = vmatprep.subr.bf16.mxu0 0
    %140 = vmatpush1.bf16.msra.mxu0 0
    %141 = vmatprep.subr.bf16.mxu0 0
    %142 = vmatpush1.bf16.msra.mxu0 0
    %143 = vmatprep.subr.bf16.mxu0 0
    %144 = vmatpush1.bf16.msra.mxu0 0
    %145 = vmatprep.subr.bf16.mxu0 0
    %146 = vmatpush1.bf16.msra.mxu0 0
    %147 = vmatprep.mubr.bf16.mxu0 0
    %148 = vmatmul.mubr.bf16.gmra.mrb[0].mxu0 %v59
    %v149 = vpop.f32.mrb[0].mxu0
    %v150 = vadd.f32 %v39, %v149
    %v151 = vpop.f32.mrb[0].mxu0
    %v152 = vadd.f32 %v39, %v151
    %v153 = vpop.f32.mrb[0].mxu0
    %v154 = vpop.f32.mrb[0].mxu0
    %155 = vdwg.mxu0
    %156 = vst [vmem:[#allocation5] sm:$0xff] %v109
    %157 = vst [vmem:[#allocation5 + $0x8] sm:$0xff] %v111
    %158 = vst [vmem:[#allocation5 + $0x10] sm:$0xff] %v150
    %159 = vst [vmem:[#allocation5 + $0x18] sm:$0xff] %v152
    // Predicated region
    $region18: #{tpu_custom_call.1} parent=1 // pred_check
      _
    $region19: #{tpu_custom_call.1} parent=1 // pred_check_branch
      %161 = sbr.rel (0) target = $region21
    $region20: #{tpu_custom_call.1} parent=1 // pred_region
      %s163 = ssub.s32 512, 512
      %164 = vsyncadd [#allocation4], %s163
      %s166 = sshll.u32 [#allocation5], 4
      %s167 = int_to_ptr.vmem [resolvable:$true] %s166
      %169 = dma.vmem_to_hbm [thread:$0]  %s167, 512, %s3, [#allocation4]
    $region21: #{tpu_custom_call.1} parent=1 // pred_fallthru
      _
    // Predicated region
    $region22: #{tpu_custom_call.1} parent=1 // pred_check
      _
    $region23: #{tpu_custom_call.1} parent=1 // pred_check_branch
      %171 = sbr.rel (0) target = $region25
    $region24: #{tpu_custom_call.1} parent=1 // pred_region
      %172 = dma.done [#allocation4], 512
    $region25: #{tpu_custom_call.1} parent=1 // pred_fallthru
      _
    %173 = vsyncpa [#allocation3], 1
    %174 = vsyncpa [#allocation4], 1

</llo_original>
